<compile_context>
chip_gen: v5e
topology: v5e:2x2
jax: 0.10.0
libtpu: 0.0.40
codegen_flags: <defaults>
</compile_context>

<pallas_src>
import jax
import jax.numpy as jnp
from jax.experimental import pallas as pl
from jax.experimental.pallas import tpu as pltpu

# ----------------------------- config (synthetic) -----------------------------
NOISE_DIM = 32
LABEL_DIM = 8
GENERATOR_UNITS = [NOISE_DIM + LABEL_DIM, 64, 128, 32]   # cfg.generatorUnits
NEGATIVE_SLOPE = 0.2                                     # cfg.negative_slope

IN_DIM, H1, H2, OUT_DIM = GENERATOR_UNITS

MATMUL_DTYPE = jnp.bfloat16        # MXU inputs (f32 accumulation)


def _round_up(n, m):
    return ((n + m - 1) // m) * m


def _default_max_tile_b():
    """v5e has 16 MiB default scoped VMEM -> 2048 rows; v6e/v7x 32 MiB -> 4096."""
    try:
        kind = jax.devices()[0].device_kind.lower()
    except Exception:
        return 2048
    if "v5e" in kind or "v5 lite" in kind or "v5litepod" in kind:
        return 2048
    return 4096


def _pick_tile_b(B, max_tile):
    """Sublane-aligned batch tile.

    Small batches: one full-array block (no divisibility constraint needed).
    Larger batches: at least 2 grid steps (v7x dual-TC sharding), capped at
    max_tile; the last block may be ragged (Pallas masks it).
    """
    if B <= 512:
        return max(1, B)                                   # single full block
    tb = min(max_tile, _round_up(pl.cdiv(B, 2), 8))        # >= 2 steps
    return max(8, tb)


# --------------------------------- kernel -------------------------------------
def generator_kernel(x_ref,
                     w1_ref, b1_ref,
                     w2_ref, b2_ref,
                     w3_ref, b3_ref,
                     o_ref):
    """One batch tile: three (linear + leaky_relu) stages, fully in VMEM."""

    def leaky_relu(v):                       # f32 elementwise (v5e-safe)
        return jnp.where(v > 0, v, NEGATIVE_SLOPE * v)

    mm_dt = w1_ref.dtype                     # bf16 MXU inputs

    # layer 1: single K=40 matmul (concat done once upstream)
    h = jnp.dot(x_ref[...].astype(mm_dt), w1_ref[...],
                preferred_element_type=jnp.float32) + b1_ref[...]
    h = leaky_relu(h)

    # layer 2
    h = jnp.dot(h.astype(mm_dt), w2_ref[...],
                preferred_element_type=jnp.float32) + b2_ref[...]
    h = leaky_relu(h)

    # layer 3 — leaky_relu applied on purpose (dead-branch bug in the original)
    h = jnp.dot(h.astype(mm_dt), w3_ref[...],
                preferred_element_type=jnp.float32) + b3_ref[...]
    h = leaky_relu(h)

    o_ref[...] = h.astype(o_ref.dtype)


# ----------------------- one-time parameter preparation ------------------------
def prepare_params(torch_style_params, matmul_dtype=MATMUL_DTYPE):
    """Transpose (out,in)->(in,out), cast weights to the MXU dtype, and make
    biases 2-D f32.  Do this ONCE."""
    (w1, b1), (w2, b2), (w3, b3) = torch_style_params
    w1t = jnp.asarray(w1).T.astype(matmul_dtype)        # (40, 64)
    w2t = jnp.asarray(w2).T.astype(matmul_dtype)        # (64, 128)
    w3t = jnp.asarray(w3).T.astype(matmul_dtype)        # (128, 32)
    b1r = jnp.asarray(b1).reshape(1, -1).astype(jnp.float32)
    b2r = jnp.asarray(b2).reshape(1, -1).astype(jnp.float32)
    b3r = jnp.asarray(b3).reshape(1, -1).astype(jnp.float32)
    return (w1t, b1r, w2t, b2r, w3t, b3r)


# --------------------------------- wrapper ------------------------------------
def generator_forward(x, label, prepared_params, tile_b=None):
    """x: (B, NOISE_DIM) f32, label: (B, LABEL_DIM) f32 -> (B, OUT_DIM) f32."""
    w1, b1, w2, b2, w3, b3 = prepared_params

    B = x.shape[0]
    # Concat once upstream (tiny pass, fusable); layer 1 becomes one K=40 matmul.
    xin = jnp.concatenate(
        [x.astype(jnp.float32), label.astype(jnp.float32)], axis=1)   # (B, 40)

    if tile_b is None:
        tb = _pick_tile_b(B, _default_max_tile_b())
    else:
        tb = max(8, _round_up(tile_b, 8)) if tile_b < B else B

    grid = (pl.cdiv(B, tb),)          # ragged final block handled by Pallas

    def batch_map(i):
        return (i, 0)

    def const_map(i):
        return (0, 0)

    out = pl.pallas_call(
        generator_kernel,
        out_shape=jax.ShapeDtypeStruct((B, OUT_DIM), jnp.float32),
        grid=grid,
        in_specs=[
            pl.BlockSpec((tb, IN_DIM), batch_map),             # x||label (streamed)
            pl.BlockSpec((IN_DIM, H1), const_map),             # W1 (resident)
            pl.BlockSpec((1, H1), const_map),                  # b1 (resident)
            pl.BlockSpec((H1, H2), const_map),                 # W2 (resident)
            pl.BlockSpec((1, H2), const_map),                  # b2 (resident)
            pl.BlockSpec((H2, OUT_DIM), const_map),            # W3 (resident)
            pl.BlockSpec((1, OUT_DIM), const_map),             # b3 (resident)
        ],
        out_specs=pl.BlockSpec((tb, OUT_DIM), batch_map),
        compiler_params=pltpu.CompilerParams(
            dimension_semantics=("parallel",)),                # 2 TCs on v7x
    )(xin, w1, b1, w2, b2, w3, b3)

    return out


# --------------------------- deterministic params ------------------------------
def init_params(key):
    """PyTorch-style nn.Linear params: weight (out,in), bias (out,)."""
    params = []
    for i in range(len(GENERATOR_UNITS) - 1):
        fan_in, fan_out = GENERATOR_UNITS[i], GENERATOR_UNITS[i + 1]
        key, kw, kb = jax.random.split(key, 3)
        bound = 1.0 / jnp.sqrt(fan_in)
        w = jax.random.uniform(kw, (fan_out, fan_in), jnp.float32, -bound, bound)
        b = jax.random.uniform(kb, (fan_out,), jnp.float32, -bound, bound)
        params.append((w, b))
    return params


# ------------------------------ pure-JAX reference ------------------------------
def reference_forward(x, label, torch_style_params):
    h = jnp.concatenate([x, label], axis=1).astype(jnp.float32)
    for (w, b) in torch_style_params:
        h = h @ w.T + b
        h = jnp.where(h > 0, h, NEGATIVE_SLOPE * h)   # also after last layer
    return h


# ----------------------------------- main --------------------------------------
if __name__ == "__main__":
    key = jax.random.PRNGKey(0)
    k_params, k_x, k_lab = jax.random.split(key, 3)

    torch_params = init_params(k_params)
    prepped = prepare_params(torch_params)            # one-time prep

    # ---- check 1: small batch (single full-array block) ----
    batch = 2
    x = jax.random.normal(k_x, (batch, NOISE_DIM), jnp.float32)
    label = jax.random.normal(k_lab, (batch, LABEL_DIM), jnp.float32)

    out = generator_forward(x, label, prepped)
    out = jax.block_until_ready(out)

    ref = reference_forward(x, label, torch_params)   # f32 reference
    assert out.shape == (batch, OUT_DIM)
    # bf16 MXU inputs with f32 accumulation -> loose-ish tolerance vs f32 ref
    assert jnp.allclose(out, ref, atol=3e-2, rtol=3e-2), "mismatch vs reference"

    # ---- check 2: multi-step grid with ragged final tile (B % tb != 0) ----
    batch2 = 50
    k_x2, k_lab2 = jax.random.split(k_x)
    x2 = jax.random.normal(k_x2, (batch2, NOISE_DIM), jnp.float32)
    label2 = jax.random.normal(k_lab2, (batch2, LABEL_DIM), jnp.float32)

    out2 = generator_forward(x2, label2, prepped, tile_b=16)   # grid=4, last tile ragged
    out2 = jax.block_until_ready(out2)
    ref2 = reference_forward(x2, label2, torch_params)
    assert out2.shape == (batch2, OUT_DIM)
    assert jnp.allclose(out2, ref2, atol=3e-2, rtol=3e-2), "mismatch (ragged tiles)"

    print("KERNEL_OK")
</pallas_src>

<mosaic_0001>
module attributes {stable_mosaic.version = 11 : i64} {
  func.func @generator_kernel(%arg0: i32, %arg1: memref<2x40xf32, #tpu.memory_space<vmem>>, %arg2: memref<40x64xbf16, #tpu.memory_space<vmem>>, %arg3: memref<1x64xf32, #tpu.memory_space<vmem>>, %arg4: memref<64x128xbf16, #tpu.memory_space<vmem>>, %arg5: memref<1x128xf32, #tpu.memory_space<vmem>>, %arg6: memref<128x32xbf16, #tpu.memory_space<vmem>>, %arg7: memref<1x32xf32, #tpu.memory_space<vmem>>, %arg8: memref<2x32xf32, #tpu.memory_space<vmem>>) attributes {dimension_semantics = [#tpu.dimension_semantics<parallel>], iteration_bounds = array<i64: 1>, scalar_prefetch = 0 : i64, scratch_operands = 0 : i64, tpu.core_type = #tpu.core_type<tc>, window_params = [{transform_indices = @transform_0, window_bounds = array<i64: 2, 40>}, {pipeline_mode = #tpu.pipeline_mode<synchronous>, transform_indices = @transform_1, window_bounds = array<i64: 40, 64>}, {pipeline_mode = #tpu.pipeline_mode<synchronous>, transform_indices = @transform_2, window_bounds = array<i64: 1, 64>}, {pipeline_mode = #tpu.pipeline_mode<synchronous>, transform_indices = @transform_3, window_bounds = array<i64: 64, 128>}, {pipeline_mode = #tpu.pipeline_mode<synchronous>, transform_indices = @transform_4, window_bounds = array<i64: 1, 128>}, {pipeline_mode = #tpu.pipeline_mode<synchronous>, transform_indices = @transform_5, window_bounds = array<i64: 128, 32>}, {pipeline_mode = #tpu.pipeline_mode<synchronous>, transform_indices = @transform_6, window_bounds = array<i64: 1, 32>}, {transform_indices = @transform_7, window_bounds = array<i64: 2, 32>}]} {
    %c0 = arith.constant 0 : index
    %c0_0 = arith.constant 0 : index
    %0 = vector.load %arg1[%c0, %c0_0] : memref<2x40xf32, #tpu.memory_space<vmem>>, vector<2x40xf32>
    %1 = arith.truncf %0 : vector<2x40xf32> to vector<2x40xbf16>
    %c0_1 = arith.constant 0 : index
    %c0_2 = arith.constant 0 : index
    %2 = vector.load %arg2[%c0_1, %c0_2] : memref<40x64xbf16, #tpu.memory_space<vmem>>, vector<40x64xbf16>
    %cst = arith.constant dense<0.000000e+00> : vector<2x64xf32>
    %3 = tpu.matmul %1, %2, %cst {dimension_numbers = #tpu.dot_dimension_numbers<[1], [0], [0], [1], [0, 0, 1, 1], [], []>} : vector<2x40xbf16>, vector<40x64xbf16>, vector<2x64xf32> -> vector<2x64xf32>
    %c0_3 = arith.constant 0 : index
    %c0_4 = arith.constant 0 : index
    %4 = vector.load %arg3[%c0_3, %c0_4] : memref<1x64xf32, #tpu.memory_space<vmem>>, vector<1x64xf32>
    %5 = vector.broadcast %4 : vector<1x64xf32> to vector<2x64xf32>
    %6 = arith.addf %3, %5 : vector<2x64xf32>
    %cst_5 = arith.constant 0.000000e+00 : f32
    %7 = vector.broadcast %cst_5 : f32 to vector<2x64xf32>
    %8 = arith.cmpf ogt, %6, %7 : vector<2x64xf32>
    %cst_6 = arith.constant 2.000000e-01 : f32
    %9 = vector.broadcast %cst_6 : f32 to vector<2x64xf32>
    %10 = arith.mulf %9, %6 : vector<2x64xf32>
    %11 = arith.select %8, %6, %10 : vector<2x64xi1>, vector<2x64xf32>
    %12 = arith.truncf %11 : vector<2x64xf32> to vector<2x64xbf16>
    %c0_7 = arith.constant 0 : index
    %c0_8 = arith.constant 0 : index
    %13 = vector.load %arg4[%c0_7, %c0_8] : memref<64x128xbf16, #tpu.memory_space<vmem>>, vector<64x128xbf16>
    %cst_9 = arith.constant dense<0.000000e+00> : vector<2x128xf32>
    %14 = tpu.matmul %12, %13, %cst_9 {dimension_numbers = #tpu.dot_dimension_numbers<[1], [0], [0], [1], [0, 0, 1, 1], [], []>} : vector<2x64xbf16>, vector<64x128xbf16>, vector<2x128xf32> -> vector<2x128xf32>
    %c0_10 = arith.constant 0 : index
    %c0_11 = arith.constant 0 : index
    %15 = vector.load %arg5[%c0_10, %c0_11] : memref<1x128xf32, #tpu.memory_space<vmem>>, vector<1x128xf32>
    %16 = vector.broadcast %15 : vector<1x128xf32> to vector<2x128xf32>
    %17 = arith.addf %14, %16 : vector<2x128xf32>
    %cst_12 = arith.constant 0.000000e+00 : f32
    %18 = vector.broadcast %cst_12 : f32 to vector<2x128xf32>
    %19 = arith.cmpf ogt, %17, %18 : vector<2x128xf32>
    %cst_13 = arith.constant 2.000000e-01 : f32
    %20 = vector.broadcast %cst_13 : f32 to vector<2x128xf32>
    %21 = arith.mulf %20, %17 : vector<2x128xf32>
    %22 = arith.select %19, %17, %21 : vector<2x128xi1>, vector<2x128xf32>
    %23 = arith.truncf %22 : vector<2x128xf32> to vector<2x128xbf16>
    %c0_14 = arith.constant 0 : index
    %c0_15 = arith.constant 0 : index
    %24 = vector.load %arg6[%c0_14, %c0_15] : memref<128x32xbf16, #tpu.memory_space<vmem>>, vector<128x32xbf16>
    %cst_16 = arith.constant dense<0.000000e+00> : vector<2x32xf32>
    %25 = tpu.matmul %23, %24, %cst_16 {dimension_numbers = #tpu.dot_dimension_numbers<[1], [0], [0], [1], [0, 0, 1, 1], [], []>} : vector<2x128xbf16>, vector<128x32xbf16>, vector<2x32xf32> -> vector<2x32xf32>
    %c0_17 = arith.constant 0 : index
    %c0_18 = arith.constant 0 : index
    %26 = vector.load %arg7[%c0_17, %c0_18] : memref<1x32xf32, #tpu.memory_space<vmem>>, vector<1x32xf32>
    %27 = vector.broadcast %26 : vector<1x32xf32> to vector<2x32xf32>
    %28 = arith.addf %25, %27 : vector<2x32xf32>
    %cst_19 = arith.constant 0.000000e+00 : f32
    %29 = vector.broadcast %cst_19 : f32 to vector<2x32xf32>
    %30 = arith.cmpf ogt, %28, %29 : vector<2x32xf32>
    %cst_20 = arith.constant 2.000000e-01 : f32
    %31 = vector.broadcast %cst_20 : f32 to vector<2x32xf32>
    %32 = arith.mulf %31, %28 : vector<2x32xf32>
    %33 = arith.select %30, %28, %32 : vector<2x32xi1>, vector<2x32xf32>
    %c0_21 = arith.constant 0 : index
    %c0_22 = arith.constant 0 : index
    %34 = vector.load %arg8[%c0_21, %c0_22] : memref<2x32xf32, #tpu.memory_space<vmem>>, vector<2x32xf32>
    tpu.vector_store %arg8[%c0_21, %c0_22], %33 {strides = array<i32>} : memref<2x32xf32, #tpu.memory_space<vmem>>, vector<2x32xf32>,
    return
  }
  func.func @transform_0(%arg0: i32) -> (i32, i32) {
    %c0_i32 = arith.constant 0 : i32
    %c0_i32_0 = arith.constant 0 : i32
    return %arg0, %c0_i32 : i32, i32
  }
  func.func @transform_1(%arg0: i32) -> (i32, i32) {
    %c0_i32 = arith.constant 0 : i32
    %c0_i32_0 = arith.constant 0 : i32
    %c0_i32_1 = arith.constant 0 : i32
    return %c0_i32, %c0_i32_0 : i32, i32
  }
  func.func @transform_2(%arg0: i32) -> (i32, i32) {
    %c0_i32 = arith.constant 0 : i32
    %c0_i32_0 = arith.constant 0 : i32
    %c0_i32_1 = arith.constant 0 : i32
    return %c0_i32, %c0_i32_0 : i32, i32
  }
  func.func @transform_3(%arg0: i32) -> (i32, i32) {
    %c0_i32 = arith.constant 0 : i32
    %c0_i32_0 = arith.constant 0 : i32
    %c0_i32_1 = arith.constant 0 : i32
    return %c0_i32, %c0_i32_0 : i32, i32
  }
  func.func @transform_4(%arg0: i32) -> (i32, i32) {
    %c0_i32 = arith.constant 0 : i32
    %c0_i32_0 = arith.constant 0 : i32
    %c0_i32_1 = arith.constant 0 : i32
    return %c0_i32, %c0_i32_0 : i32, i32
  }
  func.func @transform_5(%arg0: i32) -> (i32, i32) {
    %c0_i32 = arith.constant 0 : i32
    %c0_i32_0 = arith.constant 0 : i32
    %c0_i32_1 = arith.constant 0 : i32
    return %c0_i32, %c0_i32_0 : i32, i32
  }
  func.func @transform_6(%arg0: i32) -> (i32, i32) {
    %c0_i32 = arith.constant 0 : i32
    %c0_i32_0 = arith.constant 0 : i32
    %c0_i32_1 = arith.constant 0 : i32
    return %c0_i32, %c0_i32_0 : i32, i32
  }
  func.func @transform_7(%arg0: i32) -> (i32, i32) {
    %c0_i32 = arith.constant 0 : i32
    %c0_i32_0 = arith.constant 0 : i32
    return %arg0, %c0_i32 : i32, i32
  }
}

</mosaic_0001>

<llo_original>
// kernel: tpu_custom_call.1
$region0: #{tpu_custom_call.1}
  #allocation0 [shape = 'u32[]', space=smem, size = 0x4, offset = 0x4, fixed_abs, tag = 'smem constant byte address 0x4 - core index']
  #allocation1 [shape = 'u32[72,128]{1,0:T(1,128)}', space=vmem, size = 0x9000, scoped, tag = 'internal scratch']
  %s0 = inlined_call_operand.vmem [shape: f32[2,40], index: 0, kind: input, shape index: {}]
  %s1 = inlined_call_operand.vmem [shape: bf16[40,64], index: 1, kind: input, shape index: {}]
  %s2 = inlined_call_operand.vmem [shape: f32[1,64], index: 2, kind: input, shape index: {}]
  %s3 = inlined_call_operand.vmem [shape: bf16[64,128], index: 3, kind: input, shape index: {}]
  %s4 = inlined_call_operand.vmem [shape: f32[1,128], index: 4, kind: input, shape index: {}]
  %s5 = inlined_call_operand.vmem [shape: bf16[128,32], index: 5, kind: input, shape index: {}]
  %s6 = inlined_call_operand.vmem [shape: f32[1,32], index: 6, kind: input, shape index: {}]
  %s7 = inlined_call_operand.hbm [shape: f32[2,32], index: 7, kind: output, shape index: {}]
  %s8 = sld [smem:[#allocation0]]
  $region38: #{tpu_custom_call.1} parent=0
    _
  %s10 = ssub.s32 1, %s8
  %s11 = scalar_select 0, %s10, %s8
  $region1: #{tpu_custom_call.1} parent=0
    #allocation2 [shape = 'u8[1024]{0}', space=vmem, size = 0x400, scoped, tag = 'output window, operand 0, single buffered']
    #allocation3 [shape = 's32[1]{0}', space=sflag, size = 0x4, scoped, tag = 'scoped memory for tpu_custom_call.1']
    %12 = vsyncpa [#allocation3], 0
    // Predicated region
    $region2: #{tpu_custom_call.1} parent=1 // pred_check
      _
    $region3: #{tpu_custom_call.1} parent=1 // pred_check_branch
      %14 = sbr.rel (0) target = $region5
    $region4: #{tpu_custom_call.1} parent=1 // pred_region
      _
    $region5: #{tpu_custom_call.1} parent=1 // pred_fallthru
      _
    // Predicated region
    $region6: #{tpu_custom_call.1} parent=1 // pred_check
      _
    $region7: #{tpu_custom_call.1} parent=1 // pred_check_branch
      %16 = sbr.rel (0) target = $region9
    $region8: #{tpu_custom_call.1} parent=1 // pred_region
      _
    $region9: #{tpu_custom_call.1} parent=1 // pred_fallthru
      _
    // Predicated region
    $region10: #{tpu_custom_call.1} parent=1 // pred_check
      _
    $region11: #{tpu_custom_call.1} parent=1 // pred_check_branch
      %18 = sbr.rel (0) target = $region13
    $region12: #{tpu_custom_call.1} parent=1 // pred_region
      _
    $region13: #{tpu_custom_call.1} parent=1 // pred_fallthru
      _
    // Predicated region
    $region14: #{tpu_custom_call.1} parent=1 // pred_check
      _
    $region15: #{tpu_custom_call.1} parent=1 // pred_check_branch
      %20 = sbr.rel (0) target = $region17
    $region16: #{tpu_custom_call.1} parent=1 // pred_region
      _
    $region17: #{tpu_custom_call.1} parent=1 // pred_fallthru
      _
    // Predicated region
    $region18: #{tpu_custom_call.1} parent=1 // pred_check
      _
    $region19: #{tpu_custom_call.1} parent=1 // pred_check_branch
      %22 = sbr.rel (0) target = $region21
    $region20: #{tpu_custom_call.1} parent=1 // pred_region
      _
    $region21: #{tpu_custom_call.1} parent=1 // pred_fallthru
      _
    // Predicated region
    $region22: #{tpu_custom_call.1} parent=1 // pred_check
      _
    $region23: #{tpu_custom_call.1} parent=1 // pred_check_branch
      %24 = sbr.rel (0) target = $region25
    $region24: #{tpu_custom_call.1} parent=1 // pred_region
      _
    $region25: #{tpu_custom_call.1} parent=1 // pred_fallthru
      _
    // Predicated region
    $region26: #{tpu_custom_call.1} parent=1 // pred_check
      _
    $region27: #{tpu_custom_call.1} parent=1 // pred_check_branch
      %26 = sbr.rel (0) target = $region29
    $region28: #{tpu_custom_call.1} parent=1 // pred_region
      _
    $region29: #{tpu_custom_call.1} parent=1 // pred_fallthru
      _
    %v28 = vld [vmem:[%s0] sm:$0x3]
    %v29 = vpack.c.bf16 %v28, %v28
    %v30 = vld [vmem:[%s1] sm:$0xf]
    %v31 = vld [vmem:[%s1 + $0x4] sm:$0xf]
    %v32 = vld [vmem:[%s1 + $0x8] sm:$0xf]
    %v33 = vld [vmem:[%s1 + $0xc] sm:$0xf]
    %v34 = vld [vmem:[%s1 + $0x10] sm:$0xf]
    %v35 = vld [vmem:[%s2] sm:$0x1]
    %v37 = vperm.slane %v35, 0
    %v44 = vunpack.c.l.b16 %v30
    %v45 = vunpack.c.l.b16 %v31
    %v46 = vunpack.c.l.b16 %v32
    %v47 = vunpack.c.l.b16 %v33
    %v48 = vunpack.c.l.b16 %v34
    %v49 = vpack.c.b16 %v45, %v44
    %v50 = vpack.c.b16 %v47, %v46
    %v51 = vpack.c.b16 %v48, %v48
    %vm54 = vcmask 326656
    %v56 = vsel %vm54, %v29, 0
    %vm58 = vcmask 1043456
    %v60 = vsel %vm58, %v51, 0
    %62 = vmatpush.bf16.msra.mxu0 0
    %63 = vmatpush.bf16.msra.mxu0 0
    %64 = vmatpush.bf16.msra.mxu0 0
    %65 = vmatpush.bf16.msra.mxu0 0
    %66 = vmatpush.bf16.msra.mxu0 0
    %67 = vmatpush.bf16.msra.mxu0 %v60
    %68 = vmatpush.bf16.msra.mxu0 %v50
    %69 = vmatpush.bf16.msra.mxu0 %v49
    %70 = vmatmul.bf16.gmra.mxu0 %v56
    %v71 = vpop.f32.mrf.mxu0
    %v72 = vadd.f32 %v37, %v71
    %v73 = vpop.f32.mrf.mxu0
    %74 = vdwg.mxu0
    %vm75 = vcmp.gt.f32.partialorder %v72, 0.0
    %v76 = vmul.f32 %v72, 0.2
    %v77 = vsel %vm75, %v72, %v76
    %v78 = vpack.c.bf16 %v77, %v77
    %v79 = vld [vmem:[%s3] sm:$0xf]
    %v80 = vld [vmem:[%s3 + $0x4] sm:$0xf]
    %v81 = vld [vmem:[%s3 + $0x8] sm:$0xf]
    %v82 = vld [vmem:[%s3 + $0xc] sm:$0xf]
    %v83 = vld [vmem:[%s3 + $0x10] sm:$0xf]
    %v84 = vld [vmem:[%s3 + $0x14] sm:$0xf]
    %v85 = vld [vmem:[%s3 + $0x18] sm:$0xf]
    %v86 = vld [vmem:[%s3 + $0x1c] sm:$0xf]
    %v87 = vld [vmem:[%s4] sm:$0x1]
    %v89 = vperm.slane %v87, 0
    %v99 = vunpack.c.l.b16 %v79
    %v100 = vunpack.c.l.b16 %v80
    %v101 = vunpack.c.l.b16 %v81
    %v102 = vunpack.c.l.b16 %v82
    %v103 = vunpack.c.l.b16 %v83
    %v104 = vunpack.c.l.b16 %v84
    %v105 = vunpack.c.l.b16 %v85
    %v106 = vunpack.c.l.b16 %v86
    %v107 = vpack.c.b16 %v100, %v99
    %v108 = vpack.c.b16 %v102, %v101
    %v109 = vpack.c.b16 %v104, %v103
    %v110 = vpack.c.b16 %v106, %v105
    %vm115 = vcmask 523264
    %v117 = vsel %vm115, %v78, 0
    %119 = vmatpush.bf16.msra.mxu0 0
    %120 = vmatpush.bf16.msra.mxu0 0
    %121 = vmatpush.bf16.msra.mxu0 0
    %122 = vmatpush.bf16.msra.mxu0 0
    %123 = vmatpush.bf16.msra.mxu0 %v110
    %124 = vmatpush.bf16.msra.mxu0 %v109
    %125 = vmatpush.bf16.msra.mxu0 %v108
    %126 = vmatpush.bf16.msra.mxu0 %v107
    %127 = vmatmul.bf16.gmra.mxu0 %v117
    %v128 = vpop.f32.mrf.mxu0
    %v129 = vadd.f32 %v89, %v128
    %v130 = vpop.f32.mrf.mxu0
    %131 = vdwg.mxu0
    %vm132 = vcmp.gt.f32.partialorder %v129, 0.0
    %v133 = vmul.f32 %v129, 0.2
    %v134 = vsel %vm132, %v129, %v133
    %v135 = vpack.c.bf16 %v134, %v134
    %v136 = vld [vmem:[%s5] sm:$0xf]
    %v137 = vld [vmem:[%s5 + $0x4] sm:$0xf]
    %v138 = vld [vmem:[%s5 + $0x8] sm:$0xf]
    %v139 = vld [vmem:[%s5 + $0xc] sm:$0xf]
    %v140 = vld [vmem:[%s5 + $0x10] sm:$0xf]
    %v141 = vld [vmem:[%s5 + $0x14] sm:$0xf]
    %v142 = vld [vmem:[%s5 + $0x18] sm:$0xf]
    %v143 = vld [vmem:[%s5 + $0x1c] sm:$0xf]
    %v144 = vld [vmem:[%s5 + $0x20] sm:$0xf]
    %v145 = vld [vmem:[%s5 + $0x24] sm:$0xf]
    %v146 = vld [vmem:[%s5 + $0x28] sm:$0xf]
    %v147 = vld [vmem:[%s5 + $0x2c] sm:$0xf]
    %v148 = vld [vmem:[%s5 + $0x30] sm:$0xf]
    %v149 = vld [vmem:[%s5 + $0x34] sm:$0xf]
    %v150 = vld [vmem:[%s5 + $0x38] sm:$0xf]
    %v151 = vld [vmem:[%s5 + $0x3c] sm:$0xf]
    %v152 = vld [vmem:[%s6] sm:$0x1]
    %v154 = vperm.slane %v152, 0
    %v172 = vunpack.c.l.b16 %v136
    %v173 = vunpack.c.l.b16 %v137
    %v174 = vunpack.c.l.b16 %v138
    %v175 = vunpack.c.l.b16 %v139
    %v176 = vunpack.c.l.b16 %v140
    %v177 = vunpack.c.l.b16 %v141
    %v178 = vunpack.c.l.b16 %v142
    %v179 = vunpack.c.l.b16 %v143
    %v180 = vunpack.c.l.b16 %v144
    %v181 = vunpack.c.l.b16 %v145
    %v182 = vunpack.c.l.b16 %v146
    %v183 = vunpack.c.l.b16 %v147
    %v184 = vunpack.c.l.b16 %v148
    %v185 = vunpack.c.l.b16 %v149
    %v186 = vunpack.c.l.b16 %v150
    %v187 = vunpack.c.l.b16 %v151
    %v188 = vpack.c.b16 %v173, %v172
    %v189 = vpack.c.b16 %v175, %v174
    %v190 = vpack.c.b16 %v177, %v176
    %v191 = vpack.c.b16 %v179, %v178
    %v192 = vpack.c.b16 %v181, %v180
    %v193 = vpack.c.b16 %v183, %v182
    %v194 = vpack.c.b16 %v185, %v184
    %v195 = vpack.c.b16 %v187, %v186
    %204 = vmatpush.bf16.msra.mxu0 %v195
    %205 = vmatpush.bf16.msra.mxu0 %v194
    %206 = vmatpush.bf16.msra.mxu0 %v193
    %207 = vmatpush.bf16.msra.mxu0 %v192
    %208 = vmatpush.bf16.msra.mxu0 %v191
    %209 = vmatpush.bf16.msra.mxu0 %v190
    %210 = vmatpush.bf16.msra.mxu0 %v189
    %211 = vmatpush.bf16.msra.mxu0 %v188
    %212 = vmatmul.bf16.gmra.mxu0 %v135
    %v213 = vpop.f32.mrf.mxu0
    %v214 = vadd.f32 %v154, %v213
    %v215 = vpop.f32.mrf.mxu0
    %216 = vdwg.mxu0
    %vm217 = vcmp.gt.f32.partialorder %v214, 0.0
    %v218 = vmul.f32 %v214, 0.2
    %v219 = vsel %vm217, %v214, %v218
    %vm220 = vcmask 254976
    %221 = vst.msk [vmem:[#allocation2] sm:$0x3] %vm220, %v219
    // Predicated region
    $region30: #{tpu_custom_call.1} parent=1 // pred_check
      _
    $region31: #{tpu_custom_call.1} parent=1 // pred_check_branch
      %223 = sbr.rel (0) target = $region33
    $region32: #{tpu_custom_call.1} parent=1 // pred_region
      %225 = vsyncadd [#allocation3], 0
      %s227 = sshll.u32 [#allocation2], 4
      %s228 = int_to_ptr.vmem [resolvable:$true] %s227
      %s229 = sshll.u32 %s7, 4
      %s230 = int_to_ptr.hbm [resolvable:$true] %s229
      %232 = dma.vmem_to_hbm [thread:$0]  %s228, 32, %s230, [#allocation3]
    $region33: #{tpu_custom_call.1} parent=1 // pred_fallthru
      _
    // Predicated region
    $region34: #{tpu_custom_call.1} parent=1 // pred_check
      _
    $region35: #{tpu_custom_call.1} parent=1 // pred_check_branch
      %234 = sbr.rel (0) target = $region37
    $region36: #{tpu_custom_call.1} parent=1 // pred_region
      %236 = dma.done [#allocation3], 32
    $region37: #{tpu_custom_call.1} parent=1 // pred_fallthru
      _
    %237 = vsyncpa [#allocation3], 1

</llo_original>
